<compile_context>
chip_gen: v5e
topology: v5e:2x2
jax: 0.10.0
libtpu: 0.0.40
codegen_flags: <defaults>
</compile_context>

<pallas_src>
import functools

import jax
import jax.numpy as jnp
import numpy as np
from jax.experimental import pallas as pl
from jax.experimental.pallas import tpu as pltpu


def _simple_upsample_kernel(x_ref, o_ref, *, upsample: int, bc: int):
    # x_ref: (t_s, BC) ; o_ref: (t_s, upsample*BC)
    x = x_ref[...]
    # Static unrolled loop of lane-aligned column stores.  Same HBM traffic as
    # a broadcast+reshape but no (t_s, upsample, ...) intermediate / relayout.
    for u in range(upsample):
        o_ref[:, u * bc:(u + 1) * bc] = x


def _row_align(itemsize: int) -> int:
    # Sublane granularity for the second-minor dim.
    return {4: 8, 2: 16, 1: 32}.get(itemsize, 8)


def _vmem_block_budget_bytes() -> int:
    """Budget for the double-buffered (in + out) working set, per generation."""
    try:
        cap = pltpu.get_tpu_info().vmem_capacity_bytes
    except Exception:
        cap = 64 << 20  # conservative fallback (v7x-sized)
    # ~1/4 of physical VMEM for blocks: 32 MiB on v5e/v6e (128 MiB), 16 MiB on
    # v7x (64 MiB).  Keeps blocks in the multi-MiB range that amortizes the
    # ~0.35 us per-step overhead for an HBM-write-bound copy.
    return max(8 << 20, min(cap // 4, 32 << 20))


def _pick_seq_tile(S: int, BC: int, upsample: int, itemsize: int,
                   budget_bytes: int) -> int:
    align = _row_align(itemsize)
    bc_pad = -(-BC // 128) * 128                      # lane padding
    per_row = 2 * (1 + upsample) * bc_pad * itemsize  # double-buffered in+out
    t_s = max(align, (budget_bytes // per_row) // align * align)

    if S <= align:
        return S                                      # block == full dim: legal
    if S % align == 0:
        t_s = min(t_s, S)
    else:
        # Keep t_s a multiple of `align`; ragged tail handled by cdiv grid.
        t_s = min(t_s, max(align, (S // align) * align))

    # Prefer >= 4 grid steps (both TensorCores busy on 2-TC parts, pipeline
    # overlap per core) as long as the output block stays >= ~1 MiB.
    min_out_block = 1 << 20
    while -(-S // t_s) < 4 and t_s > align:
        cand = max(align, (t_s // 2) // align * align)
        if cand == t_s or cand * upsample * bc_pad * itemsize < min_out_block:
            break
        t_s = cand
    return t_s


def _vmem_limit_bytes(t_s: int, BC: int, upsample: int, itemsize: int) -> int:
    align = _row_align(itemsize)
    bc_pad = -(-BC // 128) * 128
    rows = -(-t_s // align) * align
    block_bytes = rows * bc_pad * itemsize * (1 + upsample)  # in + out blocks
    need = 2 * block_bytes                                   # double-buffered
    # 25% + 2 MiB margin for compiler scratch; floor 16 MiB; cap 48 MiB so we
    # always leave headroom under v7x's 64 MiB physical VMEM.
    return int(min(max(need * 5 // 4 + (2 << 20), 16 << 20), 48 << 20))


def simple_upsample(src, upsample: int):
    """src: (S, B, C) -> (S*upsample, B, C), repeating each seq position."""
    S, B, C = src.shape
    if upsample == 1:
        return src  # identity — skip kernel launch entirely

    BC = B * C
    itemsize = jnp.dtype(src.dtype).itemsize
    t_s = _pick_seq_tile(S, BC, upsample, itemsize, _vmem_block_budget_bytes())
    grid = (pl.cdiv(S, t_s),)

    kernel = functools.partial(_simple_upsample_kernel, upsample=upsample, bc=BC)

    # Contiguous (free) reshape: flat layout of (S, B*C) == (S, B, C).
    x2d = src.reshape(S, BC)

    out2d = pl.pallas_call(
        kernel,
        out_shape=jax.ShapeDtypeStruct((S, upsample * BC), src.dtype),
        grid=grid,
        in_specs=[pl.BlockSpec((t_s, BC), lambda i: (i, 0))],
        # NOTE: if a profile ever shows the outbound DMA exposed, try
        # pipeline_mode=pl.Buffered(3) on this spec (output stream is
        # upsample x the input stream).
        out_specs=pl.BlockSpec((t_s, upsample * BC), lambda i: (i, 0)),
        compiler_params=pltpu.CompilerParams(
            dimension_semantics=("parallel",),
            vmem_limit_bytes=_vmem_limit_bytes(t_s, BC, upsample, itemsize),
        ),
    )(x2d)

    # Contiguous (free) reshape back: (S, upsample*B*C) flat layout equals
    # (S*upsample, B, C) flat layout of the interleaved repeat.
    return out2d.reshape(S * upsample, B, C)


def reference(src, upsample: int):
    """Pure-JAX reference mirroring the PyTorch forward exactly."""
    S, B, C = src.shape
    out = jnp.broadcast_to(src[:, None, :, :], (S, upsample, B, C))
    return out.reshape(S * upsample, B, C)


if __name__ == "__main__":
    SEQ, BATCH, CHANNELS, UPSAMPLE = 16, 2, 128, 3

    key = jax.random.PRNGKey(0)
    src = jax.random.normal(key, (SEQ, BATCH, CHANNELS), jnp.float32)

    out = simple_upsample(src, UPSAMPLE)
    out = jax.block_until_ready(out)

    ref = reference(src, UPSAMPLE)
    assert out.shape == (SEQ * UPSAMPLE, BATCH, CHANNELS)
    # Pure copy/repeat — results must match bit-exactly.
    np.testing.assert_allclose(np.asarray(out), np.asarray(ref), rtol=0, atol=0)

    print("KERNEL_OK")
</pallas_src>

<mosaic_0001>
module attributes {stable_mosaic.version = 11 : i64} {
  func.func @_simple_upsample_kernel(%arg0: i32, %arg1: memref<16x256xf32, #tpu.memory_space<vmem>>, %arg2: memref<16x768xf32, #tpu.memory_space<vmem>>) attributes {dimension_semantics = [#tpu.dimension_semantics<parallel>], iteration_bounds = array<i64: 1>, scalar_prefetch = 0 : i64, scratch_operands = 0 : i64, tpu.core_type = #tpu.core_type<tc>, window_params = [{transform_indices = @transform_0, window_bounds = array<i64: 16, 256>}, {transform_indices = @transform_1, window_bounds = array<i64: 16, 768>}]} {
    %c0 = arith.constant 0 : index
    %c0_0 = arith.constant 0 : index
    %0 = vector.load %arg1[%c0, %c0_0] : memref<16x256xf32, #tpu.memory_space<vmem>>, vector<16x256xf32>
    %c0_1 = arith.constant 0 : index
    %c0_2 = arith.constant 0 : index
    %1 = vector.load %arg2[%c0_1, %c0_2] : memref<16x768xf32, #tpu.memory_space<vmem>>, vector<16x256xf32>
    tpu.vector_store %arg2[%c0_1, %c0_2], %0 {strides = array<i32>} : memref<16x768xf32, #tpu.memory_space<vmem>>, vector<16x256xf32>,
    %c0_3 = arith.constant 0 : index
    %c256 = arith.constant 256 : index
    %2 = vector.load %arg2[%c0_3, %c256] : memref<16x768xf32, #tpu.memory_space<vmem>>, vector<16x256xf32>
    tpu.vector_store %arg2[%c0_3, %c256], %0 {strides = array<i32>} : memref<16x768xf32, #tpu.memory_space<vmem>>, vector<16x256xf32>,
    %c0_4 = arith.constant 0 : index
    %c512 = arith.constant 512 : index
    %3 = vector.load %arg2[%c0_4, %c512] : memref<16x768xf32, #tpu.memory_space<vmem>>, vector<16x256xf32>
    tpu.vector_store %arg2[%c0_4, %c512], %0 {strides = array<i32>} : memref<16x768xf32, #tpu.memory_space<vmem>>, vector<16x256xf32>,
    return
  }
  func.func @transform_0(%arg0: i32) -> (i32, i32) {
    %c0_i32 = arith.constant 0 : i32
    %c0_i32_0 = arith.constant 0 : i32
    return %arg0, %c0_i32 : i32, i32
  }
  func.func @transform_1(%arg0: i32) -> (i32, i32) {
    %c0_i32 = arith.constant 0 : i32
    %c0_i32_0 = arith.constant 0 : i32
    return %arg0, %c0_i32 : i32, i32
  }
}

</mosaic_0001>

<llo_original>
// kernel: tpu_custom_call.1
$region0: #{tpu_custom_call.1}
  #allocation0 [shape = 'u32[]', space=smem, size = 0x4, offset = 0x4, fixed_abs, tag = 'smem constant byte address 0x4 - core index']
  #allocation1 [shape = 'u32[72,128]{1,0:T(1,128)}', space=vmem, size = 0x9000, scoped, tag = 'internal scratch']
  %s0 = inlined_call_operand.hbm [shape: f32[16,256], index: 0, kind: input, shape index: {}]
  %s1 = inlined_call_operand.hbm [shape: f32[16,768], index: 1, kind: output, shape index: {}]
  %s2 = sld [smem:[#allocation0]]
  $region18: #{tpu_custom_call.1} parent=0
    _
  %s4 = ssub.s32 1, %s2
  %s5 = scalar_select 0, %s4, %s2
  $region1: #{tpu_custom_call.1} parent=0
    #allocation2 [shape = 'u8[16384]{0}', space=vmem, size = 0x4000, scoped, tag = 'input window, operand 0, single buffered']
    #allocation3 [shape = 's32[1]{0}', space=sflag, size = 0x4, scoped, tag = 'scoped memory for tpu_custom_call.1']
    #allocation4 [shape = 's32[1]{0}', space=sflag, size = 0x4, scoped, tag = 'scoped memory for tpu_custom_call.1']
    #allocation5 [shape = 'u8[49152]{0}', space=vmem, size = 0xc000, scoped, tag = 'output window, operand 0, single buffered']
    %6 = vsyncpa [#allocation3], 0
    %7 = vsyncpa [#allocation4], 0
    // Predicated region
    $region2: #{tpu_custom_call.1} parent=1 // pred_check
      _
    $region3: #{tpu_custom_call.1} parent=1 // pred_check_branch
      %9 = sbr.rel (0) target = $region5
    $region4: #{tpu_custom_call.1} parent=1 // pred_region
      %11 = vsyncadd [#allocation3], 0
      %s12 = sshll.u32 %s0, 4
      %s13 = int_to_ptr.hbm [resolvable:$true] %s12
      %s14 = sshll.u32 [#allocation2], 4
      %s15 = int_to_ptr.vmem [resolvable:$true] %s14
      %20 = dma.hbm_to_vmem [thread:$0]  %s13, 512, %s15, [#allocation3], 256, 256, 16
    $region5: #{tpu_custom_call.1} parent=1 // pred_fallthru
      _
    // Predicated region
    $region6: #{tpu_custom_call.1} parent=1 // pred_check
      _
    $region7: #{tpu_custom_call.1} parent=1 // pred_check_branch
      %22 = sbr.rel (0) target = $region9
    $region8: #{tpu_custom_call.1} parent=1 // pred_region
      %24 = dma.done [#allocation3], 512
    $region9: #{tpu_custom_call.1} parent=1 // pred_fallthru
      _
    %v25 = vld [vmem:[#allocation2] sm:$0xff]
    %v26 = vld [vmem:[#allocation2 + $0x8] sm:$0xff]
    %v27 = vld [vmem:[#allocation2 + $0x10] sm:$0xff]
    %v28 = vld [vmem:[#allocation2 + $0x18] sm:$0xff]
    %29 = vst [vmem:[#allocation5] sm:$0xff] %v25
    %30 = vst [vmem:[#allocation5 + $0x8] sm:$0xff] %v26
    %31 = vst [vmem:[#allocation5 + $0x30] sm:$0xff] %v27
    %32 = vst [vmem:[#allocation5 + $0x38] sm:$0xff] %v28
    %33 = vst [vmem:[#allocation5 + $0x10] sm:$0xff] %v25
    %34 = vst [vmem:[#allocation5 + $0x18] sm:$0xff] %v26
    %35 = vst [vmem:[#allocation5 + $0x40] sm:$0xff] %v27
    %36 = vst [vmem:[#allocation5 + $0x48] sm:$0xff] %v28
    %37 = vst [vmem:[#allocation5 + $0x20] sm:$0xff] %v25
    %38 = vst [vmem:[#allocation5 + $0x28] sm:$0xff] %v26
    %39 = vst [vmem:[#allocation5 + $0x50] sm:$0xff] %v27
    %40 = vst [vmem:[#allocation5 + $0x58] sm:$0xff] %v28
    // Predicated region
    $region10: #{tpu_custom_call.1} parent=1 // pred_check
      _
    $region11: #{tpu_custom_call.1} parent=1 // pred_check_branch
      %42 = sbr.rel (0) target = $region13
    $region12: #{tpu_custom_call.1} parent=1 // pred_region
      %44 = vsyncadd [#allocation4], 0
      %s45 = sshll.u32 [#allocation5], 4
      %s46 = int_to_ptr.vmem [resolvable:$true] %s45
      %s47 = sshll.u32 %s1, 4
      %s48 = int_to_ptr.hbm [resolvable:$true] %s47
      %53 = dma.vmem_to_hbm [thread:$0]  %s46, 1536, %s48, [#allocation4], 768, 768, 48
    $region13: #{tpu_custom_call.1} parent=1 // pred_fallthru
      _
    // Predicated region
    $region14: #{tpu_custom_call.1} parent=1 // pred_check
      _
    $region15: #{tpu_custom_call.1} parent=1 // pred_check_branch
      %55 = sbr.rel (0) target = $region17
    $region16: #{tpu_custom_call.1} parent=1 // pred_region
      %57 = dma.done [#allocation4], 1536
    $region17: #{tpu_custom_call.1} parent=1 // pred_fallthru
      _
    %58 = vsyncpa [#allocation3], 1
    %59 = vsyncpa [#allocation4], 1

</llo_original>
